<compile_context>
chip_gen: v5e
topology: v5e:2x2
jax: 0.10.0
libtpu: 0.0.40
codegen_flags: <defaults>
</compile_context>

<pallas_src>
import functools

import jax
import jax.numpy as jnp
from jax.experimental import pallas as pl
from jax.experimental.pallas import tpu as pltpu

_NEG_BIG = -1e30  # finite "-inf" for padded logit columns (avoids 0 * -inf = nan)


def _round_up(a, m):
    return (a + m - 1) // m * m


def _pick_block_batch(B, block_b):
    """Batch tile: multiple of 16 (bf16 sublane pack), <= block_b, and — when the
    batch allows it — small enough that the grid has >= 2 steps so both v7x
    TensorCores get work from the "parallel" batch axis."""
    tb = min(block_b, _round_up(B, 16))
    if tb >= B and B > 16:
        tb = _round_up(pl.cdiv(B, 2), 16)
    return max(tb, 16)


def prepare_params(w1, b1, w2, b2):
    """Pad/cast the weights once (hoist out of the per-step hot path).

    Returns (w1p, b1p, w2p, b2p, (D_in, H, C, H_PAD, C_PAD)); pass the tuple to
    model_with_loss(..., prepared=...) to skip the per-call pad/cast.
    """
    D_in, H = w1.shape
    C = w2.shape[1]
    H_PAD = _round_up(max(H, 128), 128)
    C_PAD = _round_up(max(C, 128), 128)
    # TODO(synk): if D_in/H_PAD/C_PAD ever grow beyond VMEM residency (v7x has only
    # 64 MiB physical), add K/N tiling instead of keeping weights grid-resident.
    w1p = jnp.pad(w1.astype(jnp.bfloat16), ((0, 0), (0, H_PAD - H)))
    b1p = jnp.pad(jnp.reshape(b1, (1, H)).astype(jnp.float32), ((0, 0), (0, H_PAD - H)))
    w2p = jnp.pad(w2.astype(jnp.bfloat16), ((0, H_PAD - H), (0, C_PAD - C)))
    b2p = jnp.pad(jnp.reshape(b2, (1, C)).astype(jnp.float32),
                  ((0, 0), (0, C_PAD - C)), constant_values=_NEG_BIG)
    return (w1p, b1p, w2p, b2p, (D_in, H, C, H_PAD, C_PAD))


def _mlp_forward(x_ref, w1_ref, b1_ref, w2_ref, b2_ref):
    """Linear -> ReLU -> Linear -> LogSoftmax on one batch tile. Returns f32 (TB, C_PAD)."""
    # Cast x to bf16 in-kernel (no separate pre-pass over x in HBM); MXU matmuls in
    # bf16 with f32 accumulation.
    x = x_ref[...].astype(jnp.bfloat16)
    h = jnp.dot(x, w1_ref[...], preferred_element_type=jnp.float32)
    h = jnp.maximum(h + b1_ref[...], 0.0)                               # (TB, H_PAD) f32
    logits = jnp.dot(h.astype(jnp.bfloat16), w2_ref[...],
                     preferred_element_type=jnp.float32)
    logits = logits + b2_ref[...]                                       # padded cols ~ -1e30
    # Numerically stable log-softmax in f32 on the VPU/EUP.
    m = jnp.max(logits, axis=-1, keepdims=True)
    shifted = logits - m
    lse = jnp.log(jnp.sum(jnp.exp(shifted), axis=-1, keepdims=True))
    return shifted - lse                                                # (TB, C_PAD) f32


def _mlp_fwd_kernel(x_ref, w1_ref, b1_ref, w2_ref, b2_ref, out_ref):
    logp = _mlp_forward(x_ref, w1_ref, b1_ref, w2_ref, b2_ref)
    out_ref[...] = logp.astype(out_ref.dtype)                           # bf16 store


def _mlp_fwd_loss_kernel(x_ref, w1_ref, b1_ref, w2_ref, b2_ref, lbl_ref,
                         out_ref, loss_ref, *, total_batch, block_batch):
    logp = _mlp_forward(x_ref, w1_ref, b1_ref, w2_ref, b2_ref)
    out_ref[...] = logp.astype(out_ref.dtype)                           # bf16 store

    tb, c_pad = logp.shape
    # Label selection mask built in-kernel (no one-hot DMA).
    col = jax.lax.broadcasted_iota(jnp.int32, (tb, c_pad), 1)
    sel = col == lbl_ref[...]                                           # (TB, C_PAD)
    # Mask ragged-tail rows so the partial sum only covers real samples.
    # NOTE: block_batch must equal the BlockSpec TB (row = block_index * TB + iota).
    row = (pl.program_id(0) * block_batch
           + jax.lax.broadcasted_iota(jnp.int32, (tb, 1), 0))
    valid = row < total_batch                                           # (TB, 1)
    picked = jnp.where(jnp.logical_and(sel, valid), logp, 0.0)
    # Per-tile partial NLL sum, broadcast over one (8,128) tile; wrapper sums / B.
    loss_ref[...] = jnp.full(loss_ref.shape, -jnp.sum(picked), jnp.float32)


def model_with_loss(x, w1, b1, w2, b2, labels=None, *, block_b=512, prepared=None):
    """Forward pass of ModelwithLoss.

    x: (B, D_in) f32; w1: (D_in, H); b1: (1, H) or (H,); w2: (H, C); b2: (1, C) or (C,);
    labels: (B,) int or None; prepared: optional output of prepare_params().
    Returns logp (B, C) f32 if labels is None, else (logp, scalar mean-NLL loss).
    """
    B, D_in = x.shape
    if prepared is None:
        prepared = prepare_params(w1, b1, w2, b2)
    w1p, b1p, w2p, b2p, (p_din, H, C, H_PAD, C_PAD) = prepared
    assert p_din == D_in

    TB = _pick_block_batch(B, block_b)
    G = pl.cdiv(B, TB)          # ragged tail handled by Pallas partial-block masking

    x_spec = pl.BlockSpec((TB, D_in), lambda i: (i, 0))
    w1_spec = pl.BlockSpec((D_in, H_PAD), lambda i: (0, 0))   # resident across the grid
    b1_spec = pl.BlockSpec((1, H_PAD), lambda i: (0, 0))
    w2_spec = pl.BlockSpec((H_PAD, C_PAD), lambda i: (0, 0))
    b2_spec = pl.BlockSpec((1, C_PAD), lambda i: (0, 0))
    out_spec = pl.BlockSpec((TB, C_PAD), lambda i: (i, 0))    # lane-dense bf16 stores

    compiler_params = pltpu.CompilerParams(
        dimension_semantics=("parallel",),                    # megacore-shardable on v7x
        vmem_limit_bytes=32 * 1024 * 1024,                    # explicit; fits all gens
    )

    if labels is None:
        # Inference path: no label DMA, no reduction, no loss store.
        out = pl.pallas_call(
            _mlp_fwd_kernel,
            out_shape=jax.ShapeDtypeStruct((B, C_PAD), jnp.bfloat16),
            grid_spec=pltpu.PrefetchScalarGridSpec(
                num_scalar_prefetch=0,
                grid=(G,),
                in_specs=[x_spec, w1_spec, b1_spec, w2_spec, b2_spec],
                out_specs=out_spec,
            ),
            compiler_params=compiler_params,
        )(x, w1p, b1p, w2p, b2p)
        return out[:, :C].astype(jnp.float32)

    lbl2d = labels.astype(jnp.int32).reshape(B, 1)            # tiny; no batch padding
    lbl_spec = pl.BlockSpec((TB, 1), lambda i: (i, 0))

    kernel = functools.partial(_mlp_fwd_loss_kernel, total_batch=B, block_batch=TB)
    out, partial_loss = pl.pallas_call(
        kernel,
        out_shape=(
            jax.ShapeDtypeStruct((B, C_PAD), jnp.bfloat16),
            jax.ShapeDtypeStruct((G, 8, 128), jnp.float32),   # per-tile partial NLL sums
        ),
        grid_spec=pltpu.PrefetchScalarGridSpec(
            num_scalar_prefetch=0,
            grid=(G,),
            in_specs=[x_spec, w1_spec, b1_spec, w2_spec, b2_spec, lbl_spec],
            out_specs=[out_spec, pl.BlockSpec((1, 8, 128), lambda i: (i, 0, 0))],
        ),
        compiler_params=compiler_params,
    )(x, w1p, b1p, w2p, b2p, lbl2d)

    # Mean NLL over the *global* batch; identity_loss(scalar, 'sum') is a no-op.
    loss = jnp.sum(partial_loss[:, 0, 0]) / B
    return out[:, :C].astype(jnp.float32), loss


def _reference(x, w1, b1, w2, b2, labels):
    h = jnp.maximum(x @ w1 + jnp.reshape(b1, (1, -1)), 0.0)
    logits = h @ w2 + jnp.reshape(b2, (1, -1))
    logp = jax.nn.log_softmax(logits, axis=-1)
    nll = -jnp.mean(jnp.take_along_axis(logp, labels[:, None].astype(jnp.int32), axis=1))
    return logp, nll


if __name__ == "__main__":
    # Small MLP-classifier shapes (MNIST-ish day01 config); B=200 exercises the
    # ragged tail tile (TB=112 -> grid of 2, last tile has 88 valid rows).
    B, D_in, H, C = 200, 64, 32, 10

    key = jax.random.PRNGKey(0)
    k_x, k_w1, k_b1, k_w2, k_b2, k_lbl = jax.random.split(key, 6)

    x = jax.random.normal(k_x, (B, D_in), jnp.float32)
    w1 = jax.random.uniform(k_w1, (D_in, H), jnp.float32, -1.0, 1.0) / jnp.sqrt(D_in)
    b1 = jax.random.uniform(k_b1, (1, H), jnp.float32, -1.0, 1.0) / jnp.sqrt(D_in)
    w2 = jax.random.uniform(k_w2, (H, C), jnp.float32, -1.0, 1.0) / jnp.sqrt(H)
    b2 = jax.random.uniform(k_b2, (1, C), jnp.float32, -1.0, 1.0) / jnp.sqrt(H)
    labels = jax.random.randint(k_lbl, (B,), 0, C, jnp.int32)

    # Training-style path: weights padded/cast once, reused across calls.
    prepared = prepare_params(w1, b1, w2, b2)
    out, loss = model_with_loss(x, w1, b1, w2, b2, labels, prepared=prepared)
    jax.block_until_ready((out, loss))

    # Inference path (also exercises the lazy prepare_params branch).
    out_only = model_with_loss(x, w1, b1, w2, b2, None)
    jax.block_until_ready(out_only)

    ref_out, ref_loss = _reference(x, w1, b1, w2, b2, labels)
    assert out.shape == (B, C) and out_only.shape == (B, C)
    # bf16 MXU operands + bf16 logp writeback -> relaxed tolerance vs the f32 reference.
    assert jnp.allclose(out, ref_out, atol=5e-2, rtol=5e-2)
    assert jnp.allclose(out_only, ref_out, atol=5e-2, rtol=5e-2)
    assert jnp.allclose(loss, ref_loss, atol=5e-2, rtol=5e-2)

    print("KERNEL_OK")
</pallas_src>

<mosaic_0001>
module attributes {stable_mosaic.version = 11 : i64} {
  func.func @_mlp_fwd_loss_kernel(%arg0: i32, %arg1: memref<112x64xf32, #tpu.memory_space<vmem>>, %arg2: memref<64x128xbf16, #tpu.memory_space<vmem>>, %arg3: memref<1x128xf32, #tpu.memory_space<vmem>>, %arg4: memref<128x128xbf16, #tpu.memory_space<vmem>>, %arg5: memref<1x128xf32, #tpu.memory_space<vmem>>, %arg6: memref<112x1xi32, #tpu.memory_space<vmem>>, %arg7: memref<112x128xbf16, #tpu.memory_space<vmem>>, %arg8: memref<1x8x128xf32, #tpu.memory_space<vmem>>) attributes {dimension_semantics = [#tpu.dimension_semantics<parallel>], iteration_bounds = array<i64: 2>, scalar_prefetch = 0 : i64, scratch_operands = 0 : i64, tpu.core_type = #tpu.core_type<tc>, window_params = [{transform_indices = @transform_0, window_bounds = array<i64: 112, 64>}, {pipeline_mode = #tpu.pipeline_mode<synchronous>, transform_indices = @transform_1, window_bounds = array<i64: 64, 128>}, {pipeline_mode = #tpu.pipeline_mode<synchronous>, transform_indices = @transform_2, window_bounds = array<i64: 1, 128>}, {pipeline_mode = #tpu.pipeline_mode<synchronous>, transform_indices = @transform_3, window_bounds = array<i64: 128, 128>}, {pipeline_mode = #tpu.pipeline_mode<synchronous>, transform_indices = @transform_4, window_bounds = array<i64: 1, 128>}, {transform_indices = @transform_5, window_bounds = array<i64: 112, 1>}, {transform_indices = @transform_6, window_bounds = array<i64: 112, 128>}, {transform_indices = @transform_7, window_bounds = array<i64: 1, 8, 128>}]} {
    %c0 = arith.constant 0 : index
    %c0_0 = arith.constant 0 : index
    %0 = vector.load %arg1[%c0, %c0_0] : memref<112x64xf32, #tpu.memory_space<vmem>>, vector<112x64xf32>
    %1 = arith.truncf %0 : vector<112x64xf32> to vector<112x64xbf16>
    %c0_1 = arith.constant 0 : index
    %c0_2 = arith.constant 0 : index
    %2 = vector.load %arg2[%c0_1, %c0_2] : memref<64x128xbf16, #tpu.memory_space<vmem>>, vector<64x128xbf16>
    %cst = arith.constant dense<0.000000e+00> : vector<112x128xf32>
    %3 = tpu.matmul %1, %2, %cst {dimension_numbers = #tpu.dot_dimension_numbers<[1], [0], [0], [1], [0, 0, 1, 1], [], []>} : vector<112x64xbf16>, vector<64x128xbf16>, vector<112x128xf32> -> vector<112x128xf32>
    %c0_3 = arith.constant 0 : index
    %c0_4 = arith.constant 0 : index
    %4 = vector.load %arg3[%c0_3, %c0_4] : memref<1x128xf32, #tpu.memory_space<vmem>>, vector<1x128xf32>
    %5 = vector.broadcast %4 : vector<1x128xf32> to vector<112x128xf32>
    %6 = arith.addf %3, %5 : vector<112x128xf32>
    %cst_5 = arith.constant 0.000000e+00 : f32
    %7 = vector.broadcast %cst_5 : f32 to vector<112x128xf32>
    %8 = arith.maximumf %6, %7 : vector<112x128xf32>
    %9 = arith.truncf %8 : vector<112x128xf32> to vector<112x128xbf16>
    %c0_6 = arith.constant 0 : index
    %c0_7 = arith.constant 0 : index
    %10 = vector.load %arg4[%c0_6, %c0_7] : memref<128x128xbf16, #tpu.memory_space<vmem>>, vector<128x128xbf16>
    %cst_8 = arith.constant dense<0.000000e+00> : vector<112x128xf32>
    %11 = tpu.matmul %9, %10, %cst_8 {dimension_numbers = #tpu.dot_dimension_numbers<[1], [0], [0], [1], [0, 0, 1, 1], [], []>} : vector<112x128xbf16>, vector<128x128xbf16>, vector<112x128xf32> -> vector<112x128xf32>
    %c0_9 = arith.constant 0 : index
    %c0_10 = arith.constant 0 : index
    %12 = vector.load %arg5[%c0_9, %c0_10] : memref<1x128xf32, #tpu.memory_space<vmem>>, vector<1x128xf32>
    %13 = vector.broadcast %12 : vector<1x128xf32> to vector<112x128xf32>
    %14 = arith.addf %11, %13 : vector<112x128xf32>
    %cst_11 = arith.constant dense<0xFF800000> : vector<112xf32>
    %15 = vector.multi_reduction <maximumf>, %14, %cst_11 [1] : vector<112x128xf32> to vector<112xf32>
    %16 = vector.shape_cast %15 : vector<112xf32> to vector<112x1xf32>
    %17 = vector.broadcast %16 : vector<112x1xf32> to vector<112x128xf32>
    %18 = arith.subf %14, %17 : vector<112x128xf32>
    %19 = math.exp %18 : vector<112x128xf32>
    %cst_12 = arith.constant dense<0.000000e+00> : vector<112xf32>
    %20 = vector.multi_reduction <add>, %19, %cst_12 [1] : vector<112x128xf32> to vector<112xf32>
    %21 = vector.shape_cast %20 : vector<112xf32> to vector<112x1xf32>
    %22 = math.log %21 : vector<112x1xf32>
    %23 = vector.broadcast %22 : vector<112x1xf32> to vector<112x128xf32>
    %24 = arith.subf %18, %23 : vector<112x128xf32>
    %25 = arith.truncf %24 : vector<112x128xf32> to vector<112x128xbf16>
    %c0_13 = arith.constant 0 : index
    %c0_14 = arith.constant 0 : index
    %26 = vector.load %arg7[%c0_13, %c0_14] : memref<112x128xbf16, #tpu.memory_space<vmem>>, vector<112x128xbf16>
    tpu.vector_store %arg7[%c0_13, %c0_14], %25 {strides = array<i32>} : memref<112x128xbf16, #tpu.memory_space<vmem>>, vector<112x128xbf16>,
    %27 = tpu.iota {dimensions = array<i32: 1>} : vector<112x128xi32>
    %c0_15 = arith.constant 0 : index
    %c0_16 = arith.constant 0 : index
    %28 = vector.load %arg6[%c0_15, %c0_16] : memref<112x1xi32, #tpu.memory_space<vmem>>, vector<112x1xi32>
    %29 = vector.broadcast %28 : vector<112x1xi32> to vector<112x128xi32>
    %30 = arith.cmpi eq, %27, %29 : vector<112x128xi32>
    %c112_i32 = arith.constant 112 : i32
    %31 = arith.muli %arg0, %c112_i32 : i32
    %32 = tpu.iota {dimensions = array<i32: 0>} : vector<112x1xi32>
    %33 = vector.broadcast %31 : i32 to vector<112x1xi32>
    %34 = arith.addi %33, %32 : vector<112x1xi32>
    %c200_i32 = arith.constant 200 : i32
    %35 = vector.broadcast %c200_i32 : i32 to vector<112x1xi32>
    %36 = arith.cmpi slt, %34, %35 : vector<112x1xi32>
    %37 = vector.broadcast %36 : vector<112x1xi1> to vector<112x128xi1>
    %38 = arith.andi %30, %37 : vector<112x128xi1>
    %cst_17 = arith.constant 0.000000e+00 : f32
    %39 = vector.broadcast %cst_17 : f32 to vector<112x128xf32>
    %40 = arith.select %38, %24, %39 : vector<112x128xi1>, vector<112x128xf32>
    %41 = vector.shape_cast %40 : vector<112x128xf32> to vector<1x112x128xf32>
    %cst_18 = arith.constant dense<0.000000e+00> : vector<1xf32>
    %42 = vector.multi_reduction <add>, %41, %cst_18 [1, 2] : vector<1x112x128xf32> to vector<1xf32>
    %43 = vector.shape_cast %42 : vector<1xf32> to vector<1x1x1xf32>
    %44 = vector.extract %43[0, 0, 0] : f32 from vector<1x1x1xf32>
    %cst_19 = arith.constant 0.000000e+00 : f32
    %45 = arith.subf %cst_19, %44 : f32
    %46 = vector.broadcast %45 : f32 to vector<1x8x128xf32>
    %c0_20 = arith.constant 0 : index
    %c0_21 = arith.constant 0 : index
    %c0_22 = arith.constant 0 : index
    %47 = vector.load %arg8[%c0_20, %c0_21, %c0_22] : memref<1x8x128xf32, #tpu.memory_space<vmem>>, vector<1x8x128xf32>
    tpu.vector_store %arg8[%c0_20, %c0_21, %c0_22], %46 {strides = array<i32>} : memref<1x8x128xf32, #tpu.memory_space<vmem>>, vector<1x8x128xf32>,
    return
  }
  func.func @transform_0(%arg0: i32) -> (i32, i32) {
    %c0_i32 = arith.constant 0 : i32
    %c0_i32_0 = arith.constant 0 : i32
    return %arg0, %c0_i32 : i32, i32
  }
  func.func @transform_1(%arg0: i32) -> (i32, i32) {
    %c0_i32 = arith.constant 0 : i32
    %c0_i32_0 = arith.constant 0 : i32
    %c0_i32_1 = arith.constant 0 : i32
    return %c0_i32, %c0_i32_0 : i32, i32
  }
  func.func @transform_2(%arg0: i32) -> (i32, i32) {
    %c0_i32 = arith.constant 0 : i32
    %c0_i32_0 = arith.constant 0 : i32
    %c0_i32_1 = arith.constant 0 : i32
    return %c0_i32, %c0_i32_0 : i32, i32
  }
  func.func @transform_3(%arg0: i32) -> (i32, i32) {
    %c0_i32 = arith.constant 0 : i32
    %c0_i32_0 = arith.constant 0 : i32
    %c0_i32_1 = arith.constant 0 : i32
    return %c0_i32, %c0_i32_0 : i32, i32
  }
  func.func @transform_4(%arg0: i32) -> (i32, i32) {
    %c0_i32 = arith.constant 0 : i32
    %c0_i32_0 = arith.constant 0 : i32
    %c0_i32_1 = arith.constant 0 : i32
    return %c0_i32, %c0_i32_0 : i32, i32
  }
  func.func @transform_5(%arg0: i32) -> (i32, i32) {
    %c0_i32 = arith.constant 0 : i32
    %c0_i32_0 = arith.constant 0 : i32
    return %arg0, %c0_i32 : i32, i32
  }
  func.func @transform_6(%arg0: i32) -> (i32, i32) {
    %c0_i32 = arith.constant 0 : i32
    %c0_i32_0 = arith.constant 0 : i32
    return %arg0, %c0_i32 : i32, i32
  }
  func.func @transform_7(%arg0: i32) -> (i32, i32, i32) {
    %c0_i32 = arith.constant 0 : i32
    %c0_i32_0 = arith.constant 0 : i32
    %c0_i32_1 = arith.constant 0 : i32
    return %arg0, %c0_i32, %c0_i32_0 : i32, i32, i32
  }
}

</mosaic_0001>

<llo_original>
// kernel: tpu_custom_call.1
$region0: #{tpu_custom_call.1}
  #allocation0 [shape = 'u32[]', space=smem, size = 0x4, offset = 0x4, fixed_abs, tag = 'smem constant byte address 0x4 - core index']
  #allocation1 [shape = 'u32[72,128]{1,0:T(1,128)}', space=vmem, size = 0x9000, scoped, tag = 'internal scratch']
  %s0 = inlined_call_operand.vmem [shape: f32[200,64], index: 0, kind: input, shape index: {}]
  %s1 = inlined_call_operand.vmem [shape: bf16[64,128], index: 1, kind: input, shape index: {}]
  %s2 = inlined_call_operand.vmem [shape: f32[1,128], index: 2, kind: input, shape index: {}]
  %s3 = inlined_call_operand.vmem [shape: bf16[128,128], index: 3, kind: input, shape index: {}]
  %s4 = inlined_call_operand.vmem [shape: f32[1,128], index: 4, kind: input, shape index: {}]
  %s5 = inlined_call_operand.vmem [shape: s32[200,1], index: 5, kind: input, shape index: {}]
  %s6 = inlined_call_operand.hbm [shape: bf16[200,128], index: 6, kind: output, shape index: {0}]
  %s7 = inlined_call_operand.hbm [shape: f32[2,8,128], index: 7, kind: output, shape index: {1}]
  %8 = xla_tuple %s6, %s7
  %s9 = sld [smem:[#allocation0]]
  $region65: #{tpu_custom_call.1} parent=0
    _
  %s11 = ssub.s32 1, %s9
  %s12 = scalar_select 0, %s11, %s9
  $region1: #{tpu_custom_call.1} parent=0
    #allocation2 [shape = 'u8[57344]{0}', space=vmem, size = 0xe000, scoped, tag = 'output window, operand 0']
    #allocation3 [shape = 's32[2]{0}', space=sflag, size = 0x8, scoped, tag = 'scoped memory for tpu_custom_call.1']
    #allocation4 [shape = 'u8[8192]{0}', space=vmem, size = 0x2000, scoped, tag = 'output window, operand 1']
    #allocation5 [shape = 's32[2]{0}', space=sflag, size = 0x8, scoped, tag = 'scoped memory for tpu_custom_call.1']
    %13 = vsyncpa [#allocation3], 0
    %s14 = scalar_lea.sflag [#allocation3], 1
    %15 = vsyncpa %s14, 0
    %16 = vsyncpa [#allocation5], 0
    %s17 = scalar_lea.sflag [#allocation5], 1
    %18 = vsyncpa %s17, 0
    loop: start=0, step=1, limit=4
    $region2: #{tpu_custom_call.1} parent=1 // loop_pre_header
      _
    $region3: #{tpu_custom_call.1} parent=1 // loop_header
      %s20 = sphi 0, %s24
      %p21 = scmp.ge.s32.totalorder %s20, 4
      %s30 = sphi 0, %s32
      %s33 = sphi 0, %s30
      %s34 = sphi 0, %s33
      %s50 = sphi 0, %s34
      %s54 = sphi 0, %s54
      %s56 = sphi 0, %s54
      %s57 = sphi 0, %s56
      %s71 = sphi 0, %s57
      %s75 = sphi 0, %s75
      %s77 = sphi 0, %s75
      %s78 = sphi 0, %s77
      %s92 = sphi 0, %s78
      %s96 = sphi 0, %s96
      %s98 = sphi 0, %s96
      %s99 = sphi 0, %s98
      %s113 = sphi 0, %s99
      %s117 = sphi 0, %s117
      %s119 = sphi 0, %s117
      %s120 = sphi 0, %s119
      %s134 = sphi 0, %s120
      %s140 = sphi 0, %s142
      %s143 = sphi 0, %s140
      %s144 = sphi 0, %s143
      %s160 = sphi 0, %s144
      %s166 = sphi 0, %s168
      %s169 = sphi 0, %s166
      %s170 = sphi 0, %s169
      %s186 = sphi 0, %s170
      %s192 = sphi 0, %s194
      %s195 = sphi 0, %s192
      %s196 = sphi 0, %s195
      %s212 = sphi 0, %s196
    $region4: #{tpu_custom_call.1} parent=1 // loop_header_branch
      %23 = sbr.rel (%p21) target = $region8
    $region5: #{tpu_custom_call.1} parent=1 // loop_body
      %s25 = ssub.s32 %s20, 1
      %s26 = ssub.s32 %s20, 2
      %s27 = sadd.s32 %s20, 1
      %s28 = ssub.s32 %s20, %s27
      %p29 = scmp.eq.s32.totalorder %s28, 0
      %s31 = sadd.s32 %s30, 1
      %s32 = scalar_select %p29, %s30, %s31
      %p35 = pneg %p29
      %p36 = scmp.eq.s32.totalorder %s20, 1
      %p37 = por %p35, %p36
      %p38 = scmp.ne.s32.totalorder %s30, %s33
      %p39 = scmp.eq.s32.totalorder %s20, 0
      %p40 = por %p38, %p39
      %p41 = scmp.ne.s32.totalorder %s30, %s33
      %p42 = scmp.eq.s32.totalorder %s25, 1
      %p43 = por %p41, %p42
      %p44 = scmp.ne.s32.totalorder %s33, %s34
      %p45 = scmp.eq.s32.totalorder %s25, 0
      %p46 = por %p44, %p45
      %p47 = scmp.ne.s32.totalorder %s33, %s34
      %p48 = scmp.eq.s32.totalorder %s26, 1
      %p49 = por %p47, %p48
      %p51 = scmp.ne.s32.totalorder %s34, %s50
      %p52 = scmp.eq.s32.totalorder %s26, 0
      %p53 = por %p51, %p52
      %s55 = sadd.s32 %s54, 1
      %p58 = scmp.eq.s32.totalorder %s20, 1
      %p59 = scmp.ne.s32.totalorder %s54, %s56
      %p60 = scmp.eq.s32.totalorder %s20, 0
      %p61 = por %p59, %p60
      %p62 = scmp.ne.s32.totalorder %s54, %s56
      %p63 = scmp.eq.s32.totalorder %s25, 1
      %p64 = por %p62, %p63
      %p65 = scmp.ne.s32.totalorder %s56, %s57
      %p66 = scmp.eq.s32.totalorder %s25, 0
      %p67 = por %p65, %p66
      %p68 = scmp.ne.s32.totalorder %s56, %s57
      %p69 = scmp.eq.s32.totalorder %s26, 1
      %p70 = por %p68, %p69
      %p72 = scmp.ne.s32.totalorder %s57, %s71
      %p73 = scmp.eq.s32.totalorder %s26, 0
      %p74 = por %p72, %p73
      %s76 = sadd.s32 %s75, 1
      %p79 = scmp.eq.s32.totalorder %s20, 1
      %p80 = scmp.ne.s32.totalorder %s75, %s77
      %p81 = scmp.eq.s32.totalorder %s20, 0
      %p82 = por %p80, %p81
      %p83 = scmp.ne.s32.totalorder %s75, %s77
      %p84 = scmp.eq.s32.totalorder %s25, 1
      %p85 = por %p83, %p84
      %p86 = scmp.ne.s32.totalorder %s77, %s78
      %p87 = scmp.eq.s32.totalorder %s25, 0
      %p88 = por %p86, %p87
      %p89 = scmp.ne.s32.totalorder %s77, %s78
      %p90 = scmp.eq.s32.totalorder %s26, 1
      %p91 = por %p89, %p90
      %p93 = scmp.ne.s32.totalorder %s78, %s92
      %p94 = scmp.eq.s32.totalorder %s26, 0
      %p95 = por %p93, %p94
      %s97 = sadd.s32 %s96, 1
      %p100 = scmp.eq.s32.totalorder %s20, 1
      %p101 = scmp.ne.s32.totalorder %s96, %s98
      %p102 = scmp.eq.s32.totalorder %s20, 0
      %p103 = por %p101, %p102
      %p104 = scmp.ne.s32.totalorder %s96, %s98
      %p105 = scmp.eq.s32.totalorder %s25, 1
      %p106 = por %p104, %p105
      %p107 = scmp.ne.s32.totalorder %s98, %s99
      %p108 = scmp.eq.s32.totalorder %s25, 0
      %p109 = por %p107, %p108
      %p110 = scmp.ne.s32.totalorder %s98, %s99
      %p111 = scmp.eq.s32.totalorder %s26, 1
      %p112 = por %p110, %p111
      %p114 = scmp.ne.s32.totalorder %s99, %s113
      %p115 = scmp.eq.s32.totalorder %s26, 0
      %p116 = por %p114, %p115
      %s118 = sadd.s32 %s117, 1
      %p121 = scmp.eq.s32.totalorder %s20, 1
      %p122 = scmp.ne.s32.totalorder %s117, %s119
      %p123 = scmp.eq.s32.totalorder %s20, 0
      %p124 = por %p122, %p123
      %p125 = scmp.ne.s32.totalorder %s117, %s119
      %p126 = scmp.eq.s32.totalorder %s25, 1
      %p127 = por %p125, %p126
      %p128 = scmp.ne.s32.totalorder %s119, %s120
      %p129 = scmp.eq.s32.totalorder %s25, 0
      %p130 = por %p128, %p129
      %p131 = scmp.ne.s32.totalorder %s119, %s120
      %p132 = scmp.eq.s32.totalorder %s26, 1
      %p133 = por %p131, %p132
      %p135 = scmp.ne.s32.totalorder %s120, %s134
      %p136 = scmp.eq.s32.totalorder %s26, 0
      %p137 = por %p135, %p136
      %s138 = ssub.s32 %s20, %s27
      %p139 = scmp.eq.s32.totalorder %s138, 0
      %s141 = sadd.s32 %s140, 1
      %s142 = scalar_select %p139, %s140, %s141
      %p145 = pneg %p139
      %p146 = scmp.eq.s32.totalorder %s20, 1
      %p147 = por %p145, %p146
      %p148 = scmp.ne.s32.totalorder %s140, %s143
      %p149 = scmp.eq.s32.totalorder %s20, 0
      %p150 = por %p148, %p149
      %p151 = scmp.ne.s32.totalorder %s140, %s143
      %p152 = scmp.eq.s32.totalorder %s25, 1
      %p153 = por %p151, %p152
      %p154 = scmp.ne.s32.totalorder %s143, %s144
      %p155 = scmp.eq.s32.totalorder %s25, 0
      %p156 = por %p154, %p155
      %p157 = scmp.ne.s32.totalorder %s143, %s144
      %p158 = scmp.eq.s32.totalorder %s26, 1
      %p159 = por %p157, %p158
      %p161 = scmp.ne.s32.totalorder %s144, %s160
      %p162 = scmp.eq.s32.totalorder %s26, 0
      %p163 = por %p161, %p162
      %s164 = ssub.s32 %s20, %s27
      %p165 = scmp.eq.s32.totalorder %s164, 0
      %s167 = sadd.s32 %s166, 1
      %s168 = scalar_select %p165, %s166, %s167
      %p171 = pneg %p165
      %p172 = scmp.eq.s32.totalorder %s20, 1
      %p173 = por %p171, %p172
      %p174 = scmp.ne.s32.totalorder %s166, %s169
      %p175 = scmp.eq.s32.totalorder %s20, 0
      %p176 = por %p174, %p175
      %p177 = scmp.ne.s32.totalorder %s166, %s169
      %p178 = scmp.eq.s32.totalorder %s25, 1
      %p179 = por %p177, %p178
      %p180 = scmp.ne.s32.totalorder %s169, %s170
      %p181 = scmp.eq.s32.totalorder %s25, 0
      %p182 = por %p180, %p181
      %p183 = scmp.ne.s32.totalorder %s169, %s170
      %p184 = scmp.eq.s32.totalorder %s26, 1
      %p185 = por %p183, %p184
      %p187 = scmp.ne.s32.totalorder %s170, %s186
      %p188 = scmp.eq.s32.totalorder %s26, 0
      %p189 = por %p187, %p188
      %s190 = ssub.s32 %s20, %s27
      %p191 = scmp.eq.s32.totalorder %s190, 0
      %s193 = sadd.s32 %s192, 1
      %s194 = scalar_select %p191, %s192, %s193
      %p197 = pneg %p191
      %p198 = scmp.eq.s32.totalorder %s20, 1
      %p199 = por %p197, %p198
      %p200 = scmp.ne.s32.totalorder %s192, %s195
      %p201 = scmp.eq.s32.totalorder %s20, 0
      %p202 = por %p200, %p201
      %p203 = scmp.ne.s32.totalorder %s192, %s195
      %p204 = scmp.eq.s32.totalorder %s25, 1
      %p205 = por %p203, %p204
      %p206 = scmp.ne.s32.totalorder %s195, %s196
      %p207 = scmp.eq.s32.totalorder %s25, 0
      %p208 = por %p206, %p207
      %p209 = scmp.ne.s32.totalorder %s195, %s196
      %p210 = scmp.eq.s32.totalorder %s26, 1
      %p211 = por %p209, %p210
      %p213 = scmp.ne.s32.totalorder %s196, %s212
      %p214 = scmp.eq.s32.totalorder %s26, 0
      %p215 = por %p213, %p214
      %p216 = scmp.le.s32.totalorder 1, %s20
      %p217 = scmp.lt.s32.totalorder %s20, 3
      %p218 = pnand %p216, %p217
      %p219 = pneg %p218
      // Predicated region
      $region9: #{tpu_custom_call.1} parent=5 // pred_check
        _
      $region10: #{tpu_custom_call.1} parent=5 // pred_check_branch
        %221 = sbr.rel (%p218) target = $region12
      $region11: #{tpu_custom_call.1} parent=5 // pred_region
        %s222 = ssub.s32 %s20, 1
        // Predicated region
        $region13: #{tpu_custom_call.1} parent=11 // pred_check
          %p223 = pneg %p67
        $region14: #{tpu_custom_call.1} parent=11 // pred_check_branch
          %225 = sbr.rel (%p223) target = $region16
        $region15: #{tpu_custom_call.1} parent=11 // pred_region
          _
        $region16: #{tpu_custom_call.1} parent=11 // pred_fallthru
          _
        // Predicated region
        $region17: #{tpu_custom_call.1} parent=11 // pred_check
          %p226 = pneg %p88
        $region18: #{tpu_custom_call.1} parent=11 // pred_check_branch
          %228 = sbr.rel (%p226) target = $region20
        $region19: #{tpu_custom_call.1} parent=11 // pred_region
          _
        $region20: #{tpu_custom_call.1} parent=11 // pred_fallthru
          _
        // Predicated region
        $region21: #{tpu_custom_call.1} parent=11 // pred_check
          %p229 = pneg %p109
        $region22: #{tpu_custom_call.1} parent=11 // pred_check_branch
          %231 = sbr.rel (%p229) target = $region24
        $region23: #{tpu_custom_call.1} parent=11 // pred_region
          _
        $region24: #{tpu_custom_call.1} parent=11 // pred_fallthru
          _
        // Predicated region
        $region25: #{tpu_custom_call.1} parent=11 // pred_check
          %p232 = pneg %p130
        $region26: #{tpu_custom_call.1} parent=11 // pred_check_branch
          %234 = sbr.rel (%p232) target = $region28
        $region27: #{tpu_custom_call.1} parent=11 // pred_region
          _
        $region28: #{tpu_custom_call.1} parent=11 // pred_fallthru
          _
      $region12: #{tpu_custom_call.1} parent=5 // pred_fallthru
        _
      %p235 = scmp.lt.s32.totalorder %s20, 2
      // Predicated region
      $region29: #{tpu_custom_call.1} parent=5 // pred_check
        %p236 = pneg %p235
      $region30: #{tpu_custom_call.1} parent=5 // pred_check_branch
        %238 = sbr.rel (%p236) target = $region32
      $region31: #{tpu_custom_call.1} parent=5 // pred_region
        // Predicated region
        $region33: #{tpu_custom_call.1} parent=31 // pred_check
          %p239 = pneg %p40
        $region34: #{tpu_custom_call.1} parent=31 // pred_check_branch
          %241 = sbr.rel (%p239) target = $region36
        $region35: #{tpu_custom_call.1} parent=31 // pred_region
          %s242 = smul.u32 14, %s20
          %s243 = ssub.s32 25, %s242
          %p244 = scmp.lt.s32.totalorder %s243, 14
          %s245 = scalar_select %p244, %s243, 14
          %s246 = smul.u32 8, %s245
          %p247 = scmp.lt.s32.totalorder %s242, 24
          %s248 = scalar_select %p247, %s242, 24
          %s249 = smul.addr %s248, 8
          %s250 = scalar_lea.vmem %s0, %s249
          %s251 = smul.u32 14, %s20
          %s252 = ssub.s32 25, %s251
          %p253 = scmp.lt.s32.totalorder %s252, 14
          %s254 = scalar_select %p253, %s252, 14
          %s255 = smul.u32 8, %s254
        $region36: #{tpu_custom_call.1} parent=31 // pred_fallthru
          _
        // Predicated region
        $region37: #{tpu_custom_call.1} parent=31 // pred_check
          %p256 = pneg %p150
        $region38: #{tpu_custom_call.1} parent=31 // pred_check_branch
          %258 = sbr.rel (%p256) target = $region40
        $region39: #{tpu_custom_call.1} parent=31 // pred_region
          %s259 = smul.u32 14, %s20
          %s260 = ssub.s32 25, %s259
          %p261 = scmp.lt.s32.totalorder %s260, 14
          %s262 = scalar_select %p261, %s260, 14
          %s263 = smul.u32 8, %s262
          %p264 = scmp.lt.s32.totalorder %s259, 24
          %s265 = scalar_select %p264, %s259, 24
          %s266 = smul.addr %s265, 8
          %s267 = scalar_lea.vmem %s5, %s266
          %s268 = smul.u32 14, %s20
          %s269 = ssub.s32 25, %s268
          %p270 = scmp.lt.s32.totalorder %s269, 14
          %s271 = scalar_select %p270, %s269, 14
          %s272 = smul.u32 8, %s271
        $region40: #{tpu_custom_call.1} parent=31 // pred_fallthru
          _
      $region32: #{tpu_custom_call.1} parent=5 // pred_fallthru
        _
      %p273 = scmp.le.s32.totalorder 1, %s20
      %p274 = scmp.lt.s32.totalorder %s20, 3
      %p275 = pnand %p273, %p274
      %p276 = pneg %p275
      // Predicated region
      $region41: #{tpu_custom_call.1} parent=5 // pred_check
        _
      $region42: #{tpu_custom_call.1} parent=5 // pred_check_branch
        %278 = sbr.rel (%p275) target = $region44
      $region43: #{tpu_custom_call.1} parent=5 // pred_region
        %s279 = ssub.s32 %s20, 1
        %s280 = smul.u32 14, %s25
        %s281 = ssub.s32 25, %s280
        %p282 = scmp.lt.s32.totalorder %s281, 14
        %s283 = scalar_select %p282, %s281, 14
        %s284 = smul.u32 8, %s283
        %p285 = scmp.lt.s32.totalorder %s280, 24
        %s286 = scalar_select %p285, %s280, 24
        %s287 = smul.addr %s286, 8
        %s288 = scalar_lea.vmem %s0, %s287
        %p289 = pneg %p46
        %p290 = pneg %p43
        %p291 = pneg %p67
        %p292 = pneg %p64
        %p293 = pneg %p88
        %p294 = pneg %p85
        %p295 = pneg %p109
        %p296 = pneg %p106
        %p297 = pneg %p130
        %p298 = pneg %p127
        %s299 = smul.u32 14, %s25
        %s300 = ssub.s32 25, %s299
        %p301 = scmp.lt.s32.totalorder %s300, 14
        %s302 = scalar_select %p301, %s300, 14
        %s303 = smul.u32 8, %s302
        %p304 = scmp.lt.s32.totalorder %s299, 24
        %s305 = scalar_select %p304, %s299, 24
        %s306 = smul.addr %s305, 8
        %s307 = scalar_lea.vmem %s5, %s306
        %p308 = pneg %p156
        %p309 = pneg %p153
        %p310 = pneg %p182
        %p311 = pneg %p179
        %s312 = sand.u32 %s169, 1
        %s313 = scalar_lea.sflag [#allocation3], %s312
        %s314 = sand.u32 %s169, 1
        %s315 = smul.addr %s314, 56
        %s316 = scalar_lea.vmem [#allocation2], %s315
        %p317 = pneg %p208
        %p318 = pneg %p205
        %s319 = sand.u32 %s195, 1
        %s320 = scalar_lea.sflag [#allocation5], %s319
        %s321 = sand.u32 %s195, 1
        %s322 = smul.addr %s321, 8
        %s323 = scalar_lea.vmem [#allocation4], %s322
        %s324 = smul.u32 14, %s25
        %s325 = ssub.s32 25, %s324
        %p326 = scmp.lt.s32.totalorder %s325, 14
        %s327 = scalar_select %p326, %s325, 14
        %s328 = smul.u32 8, %s327
        %p329 = scmp.lt.s32.totalorder %s324, 24
        %s330 = scalar_select %p329, %s324, 24
        %s331 = smul.addr %s330, 8
        %s332 = scalar_lea.vmem %s0, %s331
        %s333 = smul.u32 14, %s25
        %s334 = ssub.s32 25, %s333
        %p335 = scmp.lt.s32.totalorder %s334, 14
        %s336 = scalar_select %p335, %s334, 14
        %s337 = smul.u32 8, %s336
        %s338 = smul.u32 14, %s25
        %s339 = ssub.s32 25, %s338
        %p340 = scmp.lt.s32.totalorder %s339, 14
        %s341 = scalar_select %p340, %s339, 14
        %s342 = smul.u32 8, %s341
        %p343 = scmp.lt.s32.totalorder %s338, 24
        %s344 = scalar_select %p343, %s338, 24
        %s345 = smul.addr %s344, 8
        %s346 = scalar_lea.vmem %s5, %s345
        %s347 = smul.u32 14, %s25
        %s348 = ssub.s32 25, %s347
        %p349 = scmp.lt.s32.totalorder %s348, 14
        %s350 = scalar_select %p349, %s348, 14
        %s351 = smul.u32 8, %s350
        %s352 = smul.u32 14, %s25
        %s353 = ssub.s32 25, %s352
        %p354 = scmp.lt.s32.totalorder %s353, 14
        %s355 = scalar_select %p354, %s353, 14
        %s356 = smul.u32 4, %s355
        %v358 = vld [vmem:[%s332] sm:$0xff]
        %v359 = vld [vmem:[%s332 + $0x8] sm:$0xff]
        %v360 = vld [vmem:[%s332 + $0x10] sm:$0xff]
        %v361 = vld [vmem:[%s332 + $0x18] sm:$0xff]
        %v362 = vld [vmem:[%s332 + $0x20] sm:$0xff]
        %v363 = vld [vmem:[%s332 + $0x28] sm:$0xff]
        %v364 = vld [vmem:[%s332 + $0x30] sm:$0xff]
        %v365 = vld [vmem:[%s332 + $0x38] sm:$0xff]
        %v366 = vld [vmem:[%s332 + $0x40] sm:$0xff]
        %v367 = vld [vmem:[%s332 + $0x48] sm:$0xff]
        %v368 = vld [vmem:[%s332 + $0x50] sm:$0xff]
        %v369 = vld [vmem:[%s332 + $0x58] sm:$0xff]
        %v370 = vld [vmem:[%s332 + $0x60] sm:$0xff]
        %v371 = vld [vmem:[%s332 + $0x68] sm:$0xff]
        %v372 = vpack.c.bf16 %v359, %v358
        %v373 = vpack.c.bf16 %v361, %v360
        %v374 = vpack.c.bf16 %v363, %v362
        %v375 = vpack.c.bf16 %v365, %v364
        %v376 = vpack.c.bf16 %v367, %v366
        %v377 = vpack.c.bf16 %v369, %v368
        %v378 = vpack.c.bf16 %v371, %v370
        %v379 = vld [vmem:[%s1] sm:$0xf]
        %v380 = vld [vmem:[%s1 + $0x4] sm:$0xf]
        %v381 = vld [vmem:[%s1 + $0x8] sm:$0xf]
        %v382 = vld [vmem:[%s1 + $0xc] sm:$0xf]
        %v383 = vld [vmem:[%s1 + $0x10] sm:$0xf]
        %v384 = vld [vmem:[%s1 + $0x14] sm:$0xf]
        %v385 = vld [vmem:[%s1 + $0x18] sm:$0xf]
        %v386 = vld [vmem:[%s1 + $0x1c] sm:$0xf]
        %v387 = vld [vmem:[%s2] sm:$0x1]
        %v389 = vperm.slane %v387, 0
        %v399 = vunpack.c.l.b16 %v379
        %v400 = vunpack.c.l.b16 %v380
        %v401 = vunpack.c.l.b16 %v381
        %v402 = vunpack.c.l.b16 %v382
        %v403 = vunpack.c.l.b16 %v383
        %v404 = vunpack.c.l.b16 %v384
        %v405 = vunpack.c.l.b16 %v385
        %v406 = vunpack.c.l.b16 %v386
        %v407 = vpack.c.b16 %v400, %v399
        %v408 = vpack.c.b16 %v402, %v401
        %v409 = vpack.c.b16 %v404, %v403
        %v410 = vpack.c.b16 %v406, %v405
        %vm415 = vcmask 523264
        %v417 = vsel %vm415, %v372, 0
        %v420 = vsel %vm415, %v373, 0
        %v423 = vsel %vm415, %v374, 0
        %v426 = vsel %vm415, %v375, 0
        %v429 = vsel %vm415, %v376, 0
        %v432 = vsel %vm415, %v377, 0
        %v435 = vsel %vm415, %v378, 0
        %437 = vmatpush.bf16.msra.mxu0 0
        %438 = vmatpush.bf16.msra.mxu0 0
        %439 = vmatpush.bf16.msra.mxu0 0
        %440 = vmatpush.bf16.msra.mxu0 0
        %441 = vmatpush.bf16.msra.mxu0 %v410
        %442 = vmatpush.bf16.msra.mxu0 %v409
        %443 = vmatpush.bf16.msra.mxu0 %v408
        %444 = vmatpush.bf16.msra.mxu0 %v407
        %445 = vmatmul.bf16.gmra.mxu0 %v417
        %v446 = vpop.f32.mrf.mxu0
        %v447 = vadd.f32 %v389, %v446
        %v448 = vpop.f32.mrf.mxu0
        %v449 = vadd.f32 %v389, %v448
        %450 = vmatmul.bf16.gmra.mxu0 %v420
        %v451 = vpop.f32.mrf.mxu0
        %v452 = vadd.f32 %v389, %v451
        %v453 = vpop.f32.mrf.mxu0
        %v454 = vadd.f32 %v389, %v453
        %455 = vmatmul.bf16.gmra.mxu0 %v423
        %v456 = vpop.f32.mrf.mxu0
        %v457 = vadd.f32 %v389, %v456
        %v458 = vpop.f32.mrf.mxu0
        %v459 = vadd.f32 %v389, %v458
        %460 = vmatmul.bf16.gmra.mxu0 %v426
        %v461 = vpop.f32.mrf.mxu0
        %v462 = vadd.f32 %v389, %v461
        %v463 = vpop.f32.mrf.mxu0
        %v464 = vadd.f32 %v389, %v463
        %465 = vmatmul.bf16.gmra.mxu0 %v429
        %v466 = vpop.f32.mrf.mxu0
        %v467 = vadd.f32 %v389, %v466
        %v468 = vpop.f32.mrf.mxu0
        %v469 = vadd.f32 %v389, %v468
        %470 = vmatmul.bf16.gmra.mxu0 %v432
        %v471 = vpop.f32.mrf.mxu0
        %v472 = vadd.f32 %v389, %v471
        %v473 = vpop.f32.mrf.mxu0
        %v474 = vadd.f32 %v389, %v473
        %475 = vmatmul.bf16.gmra.mxu0 %v435
        %v476 = vpop.f32.mrf.mxu0
        %v477 = vadd.f32 %v389, %v476
        %v478 = vpop.f32.mrf.mxu0
        %v479 = vadd.f32 %v389, %v478
        %480 = vdwg.mxu0
        %v481 = vmax.f32 %v447, 0.0
        %v482 = vmax.f32 %v449, 0.0
        %v483 = vmax.f32 %v452, 0.0
        %v484 = vmax.f32 %v454, 0.0
        %v485 = vmax.f32 %v457, 0.0
        %v486 = vmax.f32 %v459, 0.0
        %v487 = vmax.f32 %v462, 0.0
        %v488 = vmax.f32 %v464, 0.0
        %v489 = vmax.f32 %v467, 0.0
        %v490 = vmax.f32 %v469, 0.0
        %v491 = vmax.f32 %v472, 0.0
        %v492 = vmax.f32 %v474, 0.0
        %v493 = vmax.f32 %v477, 0.0
        %v494 = vmax.f32 %v479, 0.0
        %v495 = vpack.c.bf16 %v482, %v481
        %v496 = vpack.c.bf16 %v484, %v483
        %v497 = vpack.c.bf16 %v486, %v485
        %v498 = vpack.c.bf16 %v488, %v487
        %v499 = vpack.c.bf16 %v490, %v489
        %v500 = vpack.c.bf16 %v492, %v491
        %v501 = vpack.c.bf16 %v494, %v493
        %v502 = vld [vmem:[%s3] sm:$0xf]
        %v503 = vld [vmem:[%s3 + $0x4] sm:$0xf]
        %v504 = vld [vmem:[%s3 + $0x8] sm:$0xf]
        %v505 = vld [vmem:[%s3 + $0xc] sm:$0xf]
        %v506 = vld [vmem:[%s3 + $0x10] sm:$0xf]
        %v507 = vld [vmem:[%s3 + $0x14] sm:$0xf]
        %v508 = vld [vmem:[%s3 + $0x18] sm:$0xf]
        %v509 = vld [vmem:[%s3 + $0x1c] sm:$0xf]
        %v510 = vld [vmem:[%s3 + $0x20] sm:$0xf]
        %v511 = vld [vmem:[%s3 + $0x24] sm:$0xf]
        %v512 = vld [vmem:[%s3 + $0x28] sm:$0xf]
        %v513 = vld [vmem:[%s3 + $0x2c] sm:$0xf]
        %v514 = vld [vmem:[%s3 + $0x30] sm:$0xf]
        %v515 = vld [vmem:[%s3 + $0x34] sm:$0xf]
        %v516 = vld [vmem:[%s3 + $0x38] sm:$0xf]
        %v517 = vld [vmem:[%s3 + $0x3c] sm:$0xf]
        %v518 = vld [vmem:[%s4] sm:$0x1]
        %v520 = vperm.slane %v518, 0
        %v538 = vunpack.c.l.b16 %v502
        %v539 = vunpack.c.l.b16 %v503
        %v540 = vunpack.c.l.b16 %v504
        %v541 = vunpack.c.l.b16 %v505
        %v542 = vunpack.c.l.b16 %v506
        %v543 = vunpack.c.l.b16 %v507
        %v544 = vunpack.c.l.b16 %v508
        %v545 = vunpack.c.l.b16 %v509
        %v546 = vunpack.c.l.b16 %v510
        %v547 = vunpack.c.l.b16 %v511
        %v548 = vunpack.c.l.b16 %v512
        %v549 = vunpack.c.l.b16 %v513
        %v550 = vunpack.c.l.b16 %v514
        %v551 = vunpack.c.l.b16 %v515
        %v552 = vunpack.c.l.b16 %v516
        %v553 = vunpack.c.l.b16 %v517
        %v554 = vpack.c.b16 %v539, %v538
        %v555 = vpack.c.b16 %v541, %v540
        %v556 = vpack.c.b16 %v543, %v542
        %v557 = vpack.c.b16 %v545, %v544
        %v558 = vpack.c.b16 %v547, %v546
        %v559 = vpack.c.b16 %v549, %v548
        %v560 = vpack.c.b16 %v551, %v550
        %v561 = vpack.c.b16 %v553, %v552
        %570 = vmatpush.bf16.msra.mxu0 %v561
        %571 = vmatpush.bf16.msra.mxu0 %v560
        %572 = vmatpush.bf16.msra.mxu0 %v559
        %573 = vmatpush.bf16.msra.mxu0 %v558
        %574 = vmatpush.bf16.msra.mxu0 %v557
        %575 = vmatpush.bf16.msra.mxu0 %v556
        %576 = vmatpush.bf16.msra.mxu0 %v555
        %577 = vmatpush.bf16.msra.mxu0 %v554
        %578 = vmatmul.bf16.gmra.mxu0 %v495
        %v579 = vpop.f32.mrf.mxu0
        %v580 = vadd.f32 %v520, %v579
        %v581 = vpop.f32.mrf.mxu0
        %v582 = vadd.f32 %v520, %v581
        %583 = vmatmul.bf16.gmra.mxu0 %v496
        %v584 = vpop.f32.mrf.mxu0
        %v585 = vadd.f32 %v520, %v584
        %v586 = vpop.f32.mrf.mxu0
        %v587 = vadd.f32 %v520, %v586
        %588 = vmatmul.bf16.gmra.mxu0 %v497
        %v589 = vpop.f32.mrf.mxu0
        %v590 = vadd.f32 %v520, %v589
        %v591 = vpop.f32.mrf.mxu0
        %v592 = vadd.f32 %v520, %v591
        %593 = vmatmul.bf16.gmra.mxu0 %v498
        %v594 = vpop.f32.mrf.mxu0
        %v595 = vadd.f32 %v520, %v594
        %v596 = vpop.f32.mrf.mxu0
        %v597 = vadd.f32 %v520, %v596
        %598 = vmatmul.bf16.gmra.mxu0 %v499
        %v599 = vpop.f32.mrf.mxu0
        %v600 = vadd.f32 %v520, %v599
        %v601 = vpop.f32.mrf.mxu0
        %v602 = vadd.f32 %v520, %v601
        %603 = vmatmul.bf16.gmra.mxu0 %v500
        %v604 = vpop.f32.mrf.mxu0
        %v605 = vadd.f32 %v520, %v604
        %v606 = vpop.f32.mrf.mxu0
        %v607 = vadd.f32 %v520, %v606
        %608 = vmatmul.bf16.gmra.mxu0 %v501
        %v609 = vpop.f32.mrf.mxu0
        %v610 = vadd.f32 %v520, %v609
        %v611 = vpop.f32.mrf.mxu0
        %v612 = vadd.f32 %v520, %v611
        %613 = vdwg.mxu0
        %614 = vmax.xlane.f32.xlu0 %v580
        %v615 = vpop.xlane.xlu0 %614
        %616 = vmax.xlane.f32.xlu0 %v582
        %v617 = vpop.xlane.xlu0 %616
        %618 = vmax.xlane.f32.xlu0 %v585
        %v619 = vpop.xlane.xlu0 %618
        %620 = vmax.xlane.f32.xlu0 %v587
        %v621 = vpop.xlane.xlu0 %620
        %622 = vmax.xlane.f32.xlu0 %v590
        %v623 = vpop.xlane.xlu0 %622
        %624 = vmax.xlane.f32.xlu0 %v592
        %v625 = vpop.xlane.xlu0 %624
        %626 = vmax.xlane.f32.xlu0 %v595
        %v627 = vpop.xlane.xlu0 %626
        %628 = vmax.xlane.f32.xlu0 %v597
        %v629 = vpop.xlane.xlu0 %628
        %630 = vmax.xlane.f32.xlu0 %v600
        %v631 = vpop.xlane.xlu0 %630
        %632 = vmax.xlane.f32.xlu0 %v602
        %v633 = vpop.xlane.xlu0 %632
        %634 = vmax.xlane.f32.xlu0 %v605
        %v635 = vpop.xlane.xlu0 %634
        %636 = vmax.xlane.f32.xlu0 %v607
        %v637 = vpop.xlane.xlu0 %636
        %638 = vmax.xlane.f32.xlu0 %v610
        %v639 = vpop.xlane.xlu0 %638
        %640 = vmax.xlane.f32.xlu0 %v612
        %v641 = vpop.xlane.xlu0 %640
        %v642 = vsub.f32 %v580, %v615
        %v643 = vsub.f32 %v582, %v617
        %v644 = vsub.f32 %v585, %v619
        %v645 = vsub.f32 %v587, %v621
        %v646 = vsub.f32 %v590, %v623
        %v647 = vsub.f32 %v592, %v625
        %v648 = vsub.f32 %v595, %v627
        %v649 = vsub.f32 %v597, %v629
        %v650 = vsub.f32 %v600, %v631
        %v651 = vsub.f32 %v602, %v633
        %v652 = vsub.f32 %v605, %v635
        %v653 = vsub.f32 %v607, %v637
        %v654 = vsub.f32 %v610, %v639
        %v655 = vsub.f32 %v612, %v641
        %v656 = vmul.f32 %v642, 1.442695
        %v657 = vpow.pop %v656
        %v658 = vmul.f32 %v643, 1.442695
        %v659 = vpow.pop %v658
        %v660 = vmul.f32 %v644, 1.442695
        %v661 = vpow.pop %v660
        %v662 = vmul.f32 %v645, 1.442695
        %v663 = vpow.pop %v662
        %v664 = vmul.f32 %v646, 1.442695
        %v665 = vpow.pop %v664
        %v666 = vmul.f32 %v647, 1.442695
        %v667 = vpow.pop %v666
        %v668 = vmul.f32 %v648, 1.442695
        %v669 = vpow.pop %v668
        %v670 = vmul.f32 %v649, 1.442695
        %v671 = vpow.pop %v670
        %v672 = vmul.f32 %v650, 1.442695
        %v673 = vpow.pop %v672
        %v674 = vmul.f32 %v651, 1.442695
        %v675 = vpow.pop %v674
        %v676 = vmul.f32 %v652, 1.442695
        %v677 = vpow.pop %v676
        %v678 = vmul.f32 %v653, 1.442695
        %v679 = vpow.pop %v678
        %v680 = vmul.f32 %v654, 1.442695
        %v681 = vpow.pop %v680
        %v682 = vmul.f32 %v655, 1.442695
        %v683 = vpow.pop %v682
        %684 = vadd.xlane.f32.xlu0 %v657
        %v685 = vpop.xlane.xlu0 %684
        %686 = vadd.xlane.f32.xlu0 %v659
        %v687 = vpop.xlane.xlu0 %686
        %688 = vadd.xlane.f32.xlu0 %v661
        %v689 = vpop.xlane.xlu0 %688
        %690 = vadd.xlane.f32.xlu0 %v663
        %v691 = vpop.xlane.xlu0 %690
        %692 = vadd.xlane.f32.xlu0 %v665
        %v693 = vpop.xlane.xlu0 %692
        %694 = vadd.xlane.f32.xlu0 %v667
        %v695 = vpop.xlane.xlu0 %694
        %696 = vadd.xlane.f32.xlu0 %v669
        %v697 = vpop.xlane.xlu0 %696
        %698 = vadd.xlane.f32.xlu0 %v671
        %v699 = vpop.xlane.xlu0 %698
        %700 = vadd.xlane.f32.xlu0 %v673
        %v701 = vpop.xlane.xlu0 %700
        %702 = vadd.xlane.f32.xlu0 %v675
        %v703 = vpop.xlane.xlu0 %702
        %704 = vadd.xlane.f32.xlu0 %v677
        %v705 = vpop.xlane.xlu0 %704
        %706 = vadd.xlane.f32.xlu0 %v679
        %v707 = vpop.xlane.xlu0 %706
        %708 = vadd.xlane.f32.xlu0 %v681
        %v709 = vpop.xlane.xlu0 %708
        %710 = vadd.xlane.f32.xlu0 %v683
        %v711 = vpop.xlane.xlu0 %710
        %v712 = vlog2.pop %v685
        %v713 = vmul.f32 %v712, 0.6931472
        %v714 = vlog2.pop %v687
        %v715 = vmul.f32 %v714, 0.6931472
        %v716 = vlog2.pop %v689
        %v717 = vmul.f32 %v716, 0.6931472
        %v718 = vlog2.pop %v691
        %v719 = vmul.f32 %v718, 0.6931472
        %v720 = vlog2.pop %v693
        %v721 = vmul.f32 %v720, 0.6931472
        %v722 = vlog2.pop %v695
        %v723 = vmul.f32 %v722, 0.6931472
        %v724 = vlog2.pop %v697
        %v725 = vmul.f32 %v724, 0.6931472
        %v726 = vlog2.pop %v699
        %v727 = vmul.f32 %v726, 0.6931472
        %v728 = vlog2.pop %v701
        %v729 = vmul.f32 %v728, 0.6931472
        %v730 = vlog2.pop %v703
        %v731 = vmul.f32 %v730, 0.6931472
        %v732 = vlog2.pop %v705
        %v733 = vmul.f32 %v732, 0.6931472
        %v734 = vlog2.pop %v707
        %v735 = vmul.f32 %v734, 0.6931472
        %v736 = vlog2.pop %v709
        %v737 = vmul.f32 %v736, 0.6931472
        %v738 = vlog2.pop %v711
        %v739 = vmul.f32 %v738, 0.6931472
        %v740 = vsub.f32 %v642, %v713
        %v741 = vsub.f32 %v643, %v715
        %v742 = vsub.f32 %v644, %v717
        %v743 = vsub.f32 %v645, %v719
        %v744 = vsub.f32 %v646, %v721
        %v745 = vsub.f32 %v647, %v723
        %v746 = vsub.f32 %v648, %v725
        %v747 = vsub.f32 %v649, %v727
        %v748 = vsub.f32 %v650, %v729
        %v749 = vsub.f32 %v651, %v731
        %v750 = vsub.f32 %v652, %v733
        %v751 = vsub.f32 %v653, %v735
        %v752 = vsub.f32 %v654, %v737
        %v753 = vsub.f32 %v655, %v739
        %v754 = vpack.c.bf16 %v740, %v740
        %v755 = vpack.c.bf16 %v741, %v741
        %v756 = vpack.c.bf16 %v742, %v742
        %v757 = vpack.c.bf16 %v743, %v743
        %v758 = vpack.c.bf16 %v744, %v744
        %v759 = vpack.c.bf16 %v745, %v745
        %v760 = vpack.c.bf16 %v746, %v746
        %v761 = vpack.c.bf16 %v747, %v747
        %v762 = vpack.c.bf16 %v748, %v748
        %v763 = vpack.c.bf16 %v749, %v749
        %v764 = vpack.c.bf16 %v750, %v750
        %v765 = vpack.c.bf16 %v751, %v751
        %v766 = vpack.c.bf16 %v752, %v752
        %v767 = vpack.c.bf16 %v753, %v753
        %768 = vst [vmem:[%s316] sm:$0xf] %v754
        %769 = vst [vmem:[%s316 + $0x4] sm:$0xf] %v755
        %770 = vst [vmem:[%s316 + $0x8] sm:$0xf] %v756
        %771 = vst [vmem:[%s316 + $0xc] sm:$0xf] %v757
        %772 = vst [vmem:[%s316 + $0x10] sm:$0xf] %v758
        %773 = vst [vmem:[%s316 + $0x14] sm:$0xf] %v759
        %774 = vst [vmem:[%s316 + $0x18] sm:$0xf] %v760
        %775 = vst [vmem:[%s316 + $0x1c] sm:$0xf] %v761
        %776 = vst [vmem:[%s316 + $0x20] sm:$0xf] %v762
        %777 = vst [vmem:[%s316 + $0x24] sm:$0xf] %v763
        %778 = vst [vmem:[%s316 + $0x28] sm:$0xf] %v764
        %779 = vst [vmem:[%s316 + $0x2c] sm:$0xf] %v765
        %780 = vst [vmem:[%s316 + $0x30] sm:$0xf] %v766
        %781 = vst [vmem:[%s316 + $0x34] sm:$0xf] %v767
        %v782 = vlaneseq
        %v783 = vand.u32 %v782, 127
        %v784 = vld [vmem:[%s346] sm:$0xff]
        %v785 = vld [vmem:[%s346 + $0x8] sm:$0xff]
        %v786 = vld [vmem:[%s346 + $0x10] sm:$0xff]
        %v787 = vld [vmem:[%s346 + $0x18] sm:$0xff]
        %v788 = vld [vmem:[%s346 + $0x20] sm:$0xff]
        %v789 = vld [vmem:[%s346 + $0x28] sm:$0xff]
        %v790 = vld [vmem:[%s346 + $0x30] sm:$0xff]
        %v791 = vld [vmem:[%s346 + $0x38] sm:$0xff]
        %v792 = vld [vmem:[%s346 + $0x40] sm:$0xff]
        %v793 = vld [vmem:[%s346 + $0x48] sm:$0xff]
        %v794 = vld [vmem:[%s346 + $0x50] sm:$0xff]
        %v795 = vld [vmem:[%s346 + $0x58] sm:$0xff]
        %v796 = vld [vmem:[%s346 + $0x60] sm:$0xff]
        %v797 = vld [vmem:[%s346 + $0x68] sm:$0xff]
        %798 = vset.pattern.permute.xlu0 0
        %799 = vperm.xlu0 %798, %v784
        %v800 = vpop.permute.xlu0 %799
        %801 = vset.pattern.permute.xlu0 0
        %802 = vperm.xlu0 %801, %v785
        %v803 = vpop.permute.xlu0 %802
        %804 = vset.pattern.permute.xlu0 0
        %805 = vperm.xlu0 %804, %v786
        %v806 = vpop.permute.xlu0 %805
        %807 = vset.pattern.permute.xlu0 0
        %808 = vperm.xlu0 %807, %v787
        %v809 = vpop.permute.xlu0 %808
        %810 = vset.pattern.permute.xlu0 0
        %811 = vperm.xlu0 %810, %v788
        %v812 = vpop.permute.xlu0 %811
        %813 = vset.pattern.permute.xlu0 0
        %814 = vperm.xlu0 %813, %v789
        %v815 = vpop.permute.xlu0 %814
        %816 = vset.pattern.permute.xlu0 0
        %817 = vperm.xlu0 %816, %v790
        %v818 = vpop.permute.xlu0 %817
        %819 = vset.pattern.permute.xlu0 0
        %820 = vperm.xlu0 %819, %v791
        %v821 = vpop.permute.xlu0 %820
        %822 = vset.pattern.permute.xlu0 0
        %823 = vperm.xlu0 %822, %v792
        %v824 = vpop.permute.xlu0 %823
        %825 = vset.pattern.permute.xlu0 0
        %826 = vperm.xlu0 %825, %v793
        %v827 = vpop.permute.xlu0 %826
        %828 = vset.pattern.permute.xlu0 0
        %829 = vperm.xlu0 %828, %v794
        %v830 = vpop.permute.xlu0 %829
        %831 = vset.pattern.permute.xlu0 0
        %832 = vperm.xlu0 %831, %v795
        %v833 = vpop.permute.xlu0 %832
        %834 = vset.pattern.permute.xlu0 0
        %835 = vperm.xlu0 %834, %v796
        %v836 = vpop.permute.xlu0 %835
        %837 = vset.pattern.permute.xlu0 0
        %838 = vperm.xlu0 %837, %v797
        %v839 = vpop.permute.xlu0 %838
        %vm840 = vcmp.eq.s32.totalorder %v783, %v800
        %vm841 = vcmp.eq.s32.totalorder %v783, %v803
        %vm842 = vcmp.eq.s32.totalorder %v783, %v806
        %vm843 = vcmp.eq.s32.totalorder %v783, %v809
        %vm844 = vcmp.eq.s32.totalorder %v783, %v812
        %vm845 = vcmp.eq.s32.totalorder %v783, %v815
        %vm846 = vcmp.eq.s32.totalorder %v783, %v818
        %vm847 = vcmp.eq.s32.totalorder %v783, %v821
        %vm848 = vcmp.eq.s32.totalorder %v783, %v824
        %vm849 = vcmp.eq.s32.totalorder %v783, %v827
        %vm850 = vcmp.eq.s32.totalorder %v783, %v830
        %vm851 = vcmp.eq.s32.totalorder %v783, %v833
        %vm852 = vcmp.eq.s32.totalorder %v783, %v836
        %vm853 = vcmp.eq.s32.totalorder %v783, %v839
        %s854 = smul.u32 %s25, 112
        %v855 = vlaneseq
        %v856 = vshrl.u32 %v855, 7
        %v857 = vadd.s32 %v856, 8
        %v858 = vadd.s32 %v856, 16
        %v859 = vadd.s32 %v856, 24
        %v860 = vadd.s32 %v856, 32
        %v861 = vadd.s32 %v856, 40
        %v862 = vadd.s32 %v856, 48
        %v863 = vadd.s32 %v856, 56
        %v864 = vadd.s32 %v856, 64
        %v865 = vadd.s32 %v856, 72
        %v866 = vadd.s32 %v856, 80
        %v867 = vadd.s32 %v856, 88
        %v868 = vadd.s32 %v856, 96
        %v869 = vadd.s32 %v856, 104
        %v870 = vstv %s854
        %v871 = vadd.s32 %v870, %v856
        %v872 = vadd.s32 %v870, %v857
        %v873 = vadd.s32 %v870, %v858
        %v874 = vadd.s32 %v870, %v859
        %v875 = vadd.s32 %v870, %v860
        %v876 = vadd.s32 %v870, %v861
        %v877 = vadd.s32 %v870, %v862
        %v878 = vadd.s32 %v870, %v863
        %v879 = vadd.s32 %v870, %v864
        %v880 = vadd.s32 %v870, %v865
        %v881 = vadd.s32 %v870, %v866
        %v882 = vadd.s32 %v870, %v867
        %v883 = vadd.s32 %v870, %v868
        %v884 = vadd.s32 %v870, %v869
        %vm885 = vcmp.lt.s32.totalorder %v871, 200
        %vm886 = vcmp.lt.s32.totalorder %v872, 200
        %vm887 = vcmp.lt.s32.totalorder %v873, 200
        %vm888 = vcmp.lt.s32.totalorder %v874, 200
        %vm889 = vcmp.lt.s32.totalorder %v875, 200
        %vm890 = vcmp.lt.s32.totalorder %v876, 200
        %vm891 = vcmp.lt.s32.totalorder %v877, 200
        %vm892 = vcmp.lt.s32.totalorder %v878, 200
        %vm893 = vcmp.lt.s32.totalorder %v879, 200
        %vm894 = vcmp.lt.s32.totalorder %v880, 200
        %vm895 = vcmp.lt.s32.totalorder %v881, 200
        %vm896 = vcmp.lt.s32.totalorder %v882, 200
        %vm897 = vcmp.lt.s32.totalorder %v883, 200
        %vm898 = vcmp.lt.s32.totalorder %v884, 200
        %v899 = vsel %vm885, 1, 0
        %v900 = vsel %vm886, 1, 0
        %v901 = vsel %vm887, 1, 0
        %v902 = vsel %vm888, 1, 0
        %v903 = vsel %vm889, 1, 0
        %v904 = vsel %vm890, 1, 0
        %v905 = vsel %vm891, 1, 0
        %v906 = vsel %vm892, 1, 0
        %v907 = vsel %vm893, 1, 0
        %v908 = vsel %vm894, 1, 0
        %v909 = vsel %vm895, 1, 0
        %v910 = vsel %vm896, 1, 0
        %v911 = vsel %vm897, 1, 0
        %v912 = vsel %vm898, 1, 0
        %vm913 = vcmp.eq.s32.totalorder %v899, 1
        %vm914 = vcmp.eq.s32.totalorder %v900, 1
        %vm915 = vcmp.eq.s32.totalorder %v901, 1
        %vm916 = vcmp.eq.s32.totalorder %v902, 1
        %vm917 = vcmp.eq.s32.totalorder %v903, 1
        %vm918 = vcmp.eq.s32.totalorder %v904, 1
        %vm919 = vcmp.eq.s32.totalorder %v905, 1
        %vm920 = vcmp.eq.s32.totalorder %v906, 1
        %vm921 = vcmp.eq.s32.totalorder %v907, 1
        %vm922 = vcmp.eq.s32.totalorder %v908, 1
        %vm923 = vcmp.eq.s32.totalorder %v909, 1
        %vm924 = vcmp.eq.s32.totalorder %v910, 1
        %vm925 = vcmp.eq.s32.totalorder %v911, 1
        %vm926 = vcmp.eq.s32.totalorder %v912, 1
        %vm927 = vmand %vm840, %vm913
        %vm928 = vmand %vm841, %vm914
        %vm929 = vmand %vm842, %vm915
        %vm930 = vmand %vm843, %vm916
        %vm931 = vmand %vm844, %vm917
        %vm932 = vmand %vm845, %vm918
        %vm933 = vmand %vm846, %vm919
        %vm934 = vmand %vm847, %vm920
        %vm935 = vmand %vm848, %vm921
        %vm936 = vmand %vm849, %vm922
        %vm937 = vmand %vm850, %vm923
        %vm938 = vmand %vm851, %vm924
        %vm939 = vmand %vm852, %vm925
        %vm940 = vmand %vm853, %vm926
        %v941 = vsel %vm927, %v740, 0.0
        %v942 = vsel %vm928, %v741, 0.0
        %v943 = vsel %vm929, %v742, 0.0
        %v944 = vsel %vm930, %v743, 0.0
        %v945 = vsel %vm931, %v744, 0.0
        %v946 = vsel %vm932, %v745, 0.0
        %v947 = vsel %vm933, %v746, 0.0
        %v948 = vsel %vm934, %v747, 0.0
        %v949 = vsel %vm935, %v748, 0.0
        %v950 = vsel %vm936, %v749, 0.0
        %v951 = vsel %vm937, %v750, 0.0
        %v952 = vsel %vm938, %v751, 0.0
        %v953 = vsel %vm939, %v752, 0.0
        %v954 = vsel %vm940, %v753, 0.0
        %v955 = vadd.f32 %v941, %v942
        %v956 = vadd.f32 %v955, %v943
        %v957 = vadd.f32 %v956, %v944
        %v958 = vadd.f32 %v957, %v945
        %v959 = vadd.f32 %v958, %v946
        %v960 = vadd.f32 %v959, %v947
        %v961 = vadd.f32 %v960, %v948
        %v962 = vadd.f32 %v961, %v949
        %v963 = vadd.f32 %v962, %v950
        %v964 = vadd.f32 %v963, %v951
        %v965 = vadd.f32 %v964, %v952
        %v966 = vadd.f32 %v965, %v953
        %v967 = vadd.f32 %v966, %v954
        %968 = vadd.xlane.f32.xlu0 %v967
        %v969 = vpop.xlane.xlu0 %968
        %v970 = vrot.slane %v969, 4
        %v971 = vadd.f32 %v969, %v970
        %v972 = vrot.slane %v971, 2
        %v973 = vadd.f32 %v971, %v972
        %v974 = vrot.slane %v973, 1
        %v975 = vadd.f32 %v973, %v974
        %s976 = vtos %v975
        %s977 = ssub.f32 0.0, %s976
        %v978 = vstv %s977
        %979 = vst [vmem:[%s323] sm:$0xff] %v978
        %s980 = sand.u32 %s169, 1
        %s981 = scalar_lea.sflag [#allocation3], %s980
        %s982 = sand.u32 %s169, 1
        %s983 = smul.addr %s982, 56
        %s984 = scalar_lea.vmem [#allocation2], %s983
        %s985 = sand.u32 %s195, 1
        %s986 = scalar_lea.sflag [#allocation5], %s985
        %s987 = sand.u32 %s195, 1
        %s988 = smul.addr %s987, 8
        %s989 = scalar_lea.vmem [#allocation4], %s988
        // Predicated region
        $region45: #{tpu_custom_call.1} parent=43 // pred_check
          %p990 = pneg %p179
        $region46: #{tpu_custom_call.1} parent=43 // pred_check_branch
          %992 = sbr.rel (%p990) target = $region48
        $region47: #{tpu_custom_call.1} parent=43 // pred_region
          %s993 = smul.u32 14, %s25
          %s994 = ssub.s32 25, %s993
          %p995 = scmp.lt.s32.totalorder %s994, 14
          %s996 = scalar_select %p995, %s994, 14
          %s997 = smul.u32 4, %s996
          %s998 = ssub.s32 56, %s997
          %s999 = sshll.u32 %s998, 4
          %1000 = vsyncadd %s981, %s999
          %p1001 = scmp.ne.s32.totalorder 0, %s997
          %s1002 = smul.addr %s993, 4
          %s1003 = scalar_lea.hbm %s6, %s1002
          %s1004 = smul.u32 4, %s996
          %s1005 = sshll.u32 %s984, 4
          %s1006 = int_to_ptr.vmem [resolvable:$true] %s1005
          %s1007 = sshll.u32 %s1003, 4
          %s1008 = int_to_ptr.hbm [resolvable:$true] %s1007
          %s1009 = sshll.u32 %s1004, 4
          %1013 = dma.vmem_to_hbm [thread:$0]  (%p1001), %s1006, %s1009, %s1008, %s981, 64, 64, 4
        $region48: #{tpu_custom_call.1} parent=43 // pred_fallthru
          _
        // Predicated region
        $region49: #{tpu_custom_call.1} parent=43 // pred_check
          %p1014 = pneg %p205
        $region50: #{tpu_custom_call.1} parent=43 // pred_check_branch
          %1016 = sbr.rel (%p1014) target = $region52
        $region51: #{tpu_custom_call.1} parent=43 // pred_region
          %1018 = vsyncadd %s986, 0
          %s1019 = smul.addr %s25, 8
          %s1020 = scalar_lea.hbm %s7, %s1019
          %s1022 = sshll.u32 %s989, 4
          %s1023 = int_to_ptr.vmem [resolvable:$true] %s1022
          %s1024 = sshll.u32 %s1020, 4
          %s1025 = int_to_ptr.hbm [resolvable:$true] %s1024
          %1027 = dma.vmem_to_hbm [thread:$0]  %s1023, 128, %s1025, %s986
        $region52: #{tpu_custom_call.1} parent=43 // pred_fallthru
          _
      $region44: #{tpu_custom_call.1} parent=5 // pred_fallthru
        _
      %p1028 = scmp.le.s32.totalorder 2, %s20
      // Predicated region
      $region53: #{tpu_custom_call.1} parent=5 // pred_check
        %p1029 = pneg %p1028
      $region54: #{tpu_custom_call.1} parent=5 // pred_check_branch
        %1031 = sbr.rel (%p1029) target = $region56
      $region55: #{tpu_custom_call.1} parent=5 // pred_region
        %s1032 = ssub.s32 %s20, 2
        // Predicated region
        $region57: #{tpu_custom_call.1} parent=55 // pred_check
          %p1033 = pneg %p185
        $region58: #{tpu_custom_call.1} parent=55 // pred_check_branch
          %1035 = sbr.rel (%p1033) target = $region60
        $region59: #{tpu_custom_call.1} parent=55 // pred_region
          %s1036 = sand.u32 %s170, 1
          %s1037 = scalar_lea.sflag [#allocation3], %s1036
          %s1038 = sand.u32 %s170, 1
          %s1039 = smul.addr %s1038, 56
          %s1040 = scalar_lea.vmem [#allocation2], %s1039
          %1042 = dma.done %s1037, 896
        $region60: #{tpu_custom_call.1} parent=55 // pred_fallthru
          _
        // Predicated region
        $region61: #{tpu_custom_call.1} parent=55 // pred_check
          %p1043 = pneg %p211
        $region62: #{tpu_custom_call.1} parent=55 // pred_check_branch
          %1045 = sbr.rel (%p1043) target = $region64
        $region63: #{tpu_custom_call.1} parent=55 // pred_region
          %s1046 = sand.u32 %s196, 1
          %s1047 = scalar_lea.sflag [#allocation5], %s1046
          %s1048 = sand.u32 %s196, 1
          %s1049 = smul.addr %s1048, 8
          %s1050 = scalar_lea.vmem [#allocation4], %s1049
          %1052 = dma.done %s1047, 128
        $region64: #{tpu_custom_call.1} parent=55 // pred_fallthru
          _
      $region56: #{tpu_custom_call.1} parent=5 // pred_fallthru
        _
    $region6: #{tpu_custom_call.1} parent=1 // loop_footer
      %s24 = sadd.s32 1, %s20
    $region7: #{tpu_custom_call.1} parent=1 // loop_footer_branch
      %19 = sbr.rel target = $region3
    $region8: #{tpu_custom_call.1} parent=1 // loop_exit
      _
    %1053 = vsyncpa [#allocation3], 1
    %s1054 = scalar_lea.sflag [#allocation3], 1
    %1055 = vsyncpa %s1054, 1
    %1056 = vsyncpa [#allocation5], 1
    %s1057 = scalar_lea.sflag [#allocation5], 1
    %1058 = vsyncpa %s1057, 1

</llo_original>
